<compile_context>
chip_gen: v6e
topology: v6e:2x2x1
jax: 0.10.0
libtpu: 0.0.40
codegen_flags: <defaults>
</compile_context>

<pallas_src>
import math
from typing import NamedTuple

import jax
import jax.numpy as jnp
from jax.experimental import pallas as pl
from jax.experimental.pallas import tpu as pltpu


class SparseMat(NamedTuple):
    """Minimal JAX-side analogue of the PyTorch SparseMat container."""
    values: jax.Array        # [N, D] dense values of the non-zeros
    indices: jax.Array       # [2, N] (row, col) indices
    cam_per_pts: jax.Array   # [num_pts]   bookkeeping (passed through)
    pts_per_cam: jax.Array   # [num_cams]  bookkeeping (passed through)
    shape: tuple             # logical dense shape (passed through)


_LANES = 128  # minimum fully-unmasked lane width


def _round_up(x: int, m: int) -> int:
    return ((x + m - 1) // m) * m


def _target_block_bytes() -> int:
    """Per-block VMEM budget, generation-aware."""
    try:
        kind = jax.devices()[0].device_kind.lower()
    except Exception:
        kind = ""
    if "v7" in kind:
        # 4 MiB x 2 bufs x (in+out) = 16 MiB, inside the 32 MiB scoped default.
        return 4 << 20
    # v5e/v6e: 2 MiB x 2 x 2 = 8 MiB, inside v5e's 16 MiB scoped default.
    return 2 << 20


def _tanh_relu_kernel(x_ref, o_ref):
    # Pure elementwise: relu on the VALU slot, tanh on the EUP slot.
    x = x_ref[...]
    o_ref[...] = jnp.tanh(jnp.maximum(x, 0)).astype(o_ref.dtype)


def _launch(arr2d: jax.Array, tile_rows: int, total: int, itemsize: int) -> jax.Array:
    rows, cols = arr2d.shape
    grid = pl.cdiv(rows, tile_rows)
    return pl.pallas_call(
        _tanh_relu_kernel,
        out_shape=jax.ShapeDtypeStruct((rows, cols), arr2d.dtype),
        grid_spec=pltpu.PrefetchScalarGridSpec(
            num_scalar_prefetch=0,
            grid=(grid,),
            in_specs=[pl.BlockSpec((tile_rows, cols), lambda i: (i, 0))],
            out_specs=pl.BlockSpec((tile_rows, cols), lambda i: (i, 0)),
        ),
        compiler_params=pltpu.CompilerParams(
            dimension_semantics=("parallel",)),
        cost_estimate=pl.CostEstimate(
            flops=total,
            transcendentals=total,
            bytes_accessed=2 * total * itemsize),
    )(arr2d)


def tanh_relu_values(values: jax.Array) -> jax.Array:
    """tanh(relu(values)) via a lane-dense, tiled pallas_call (no pad/slice)."""
    orig_shape = values.shape
    total = math.prod(orig_shape)
    if total == 0:
        return values
    itemsize = jnp.dtype(values.dtype).itemsize

    if total % _LANES == 0:
        # Lane-dense fast path: free bitcast reshape, every store unmasked.
        cols = _LANES
        rows = total // _LANES
    elif values.ndim >= 2:
        # Ragged total: run on the natural 2-D layout; last dim == full dim.
        cols = orig_shape[-1]
        rows = total // cols
    else:
        cols = 1
        rows = total
    arr2d = values.reshape(rows, cols)  # contiguous reshape: no data movement

    # Row-tile budget (VMEM lanes pad to 128 per row regardless of cols).
    lane_cols = _round_up(cols, 128)
    target_rows = max(8, _target_block_bytes() // (lane_cols * itemsize))
    if rows <= 16:
        tile_rows = rows  # single full-dim block
    else:
        # >= 2 blocks so the row axis can shard across TensorCores (v7x),
        # capped at the generation-aware block budget.  tile_rows is a
        # multiple of 8; the partial tail block (if any) is masked.
        tile_rows = min(target_rows, _round_up(pl.cdiv(rows, 2), 8))

    out2d = _launch(arr2d, tile_rows, total, itemsize)
    return out2d.reshape(orig_shape)


def tanh_score_layer(x: SparseMat) -> SparseMat:
    """Forward pass of TanhScoreLayer: relu -> tanh on values only."""
    new_values = tanh_relu_values(x.values)
    return SparseMat(new_values, x.indices, x.cam_per_pts, x.pts_per_cam, x.shape)


if __name__ == "__main__":
    key = jax.random.PRNGKey(0)
    k_vals, k_idx_r, k_idx_c, k_big, k_bf = jax.random.split(key, 5)

    # Small synthetic SparseMat: 250 non-zero entries (ragged on purpose so
    # the masked-tail fallback path is exercised), feature dim 32.
    N, D = 250, 32
    num_cams, num_pts = 4, 64

    values = jax.random.normal(k_vals, (N, D), dtype=jnp.float32)
    r_idx = jax.random.randint(k_idx_r, (N,), 0, num_cams, dtype=jnp.int32)
    c_idx = jax.random.randint(k_idx_c, (N,), 0, num_pts, dtype=jnp.int32)
    indices = jnp.stack([r_idx, c_idx], axis=0)               # [2, N]
    cam_per_pts = jnp.full((num_pts,), max(N // num_pts, 1), jnp.int32)
    pts_per_cam = jnp.full((num_cams,), max(N // num_cams, 1), jnp.int32)

    x = SparseMat(values, indices, cam_per_pts, pts_per_cam,
                  (num_cams, num_pts, D))

    out = tanh_score_layer(x)
    jax.block_until_ready(out.values)

    # Correctness vs the pure-JAX reference.
    ref = jnp.tanh(jax.nn.relu(values))
    assert out.values.shape == values.shape
    assert jnp.allclose(out.values, ref, atol=1e-6), "mismatch vs reference"
    # Metadata passed through unchanged.
    assert out.indices is indices and out.shape == x.shape

    # Lane-dense, multi-block path (total % 128 == 0).
    big = jax.random.normal(k_big, (20000, 32), dtype=jnp.float32)
    big_out = tanh_relu_values(big)
    jax.block_until_ready(big_out)
    assert jnp.allclose(big_out, jnp.tanh(jax.nn.relu(big)), atol=1e-6)

    # bf16 values supported (native bf16 compute on v6e/v7x).
    bf = jax.random.normal(k_bf, (128, 32), dtype=jnp.bfloat16)
    bf_out = tanh_relu_values(bf)
    jax.block_until_ready(bf_out)
    assert jnp.allclose(bf_out.astype(jnp.float32),
                        jnp.tanh(jax.nn.relu(bf)).astype(jnp.float32),
                        atol=2e-2)

    print("KERNEL_OK")
</pallas_src>

<mosaic_0001>
module attributes {stable_mosaic.version = 11 : i64} {
  func.func @_tanh_relu_kernel(%arg0: i32, %arg1: memref<128x32xf32, #tpu.memory_space<vmem>>, %arg2: memref<128x32xf32, #tpu.memory_space<vmem>>) attributes {dimension_semantics = [#tpu.dimension_semantics<parallel>], iteration_bounds = array<i64: 2>, scalar_prefetch = 0 : i64, scratch_operands = 0 : i64, tpu.core_type = #tpu.core_type<tc>, window_params = [{transform_indices = @transform_0, window_bounds = array<i64: 128, 32>}, {transform_indices = @transform_1, window_bounds = array<i64: 128, 32>}]} {
    %c0 = arith.constant 0 : index
    %c0_0 = arith.constant 0 : index
    %0 = vector.load %arg1[%c0, %c0_0] : memref<128x32xf32, #tpu.memory_space<vmem>>, vector<128x32xf32>
    %cst = arith.constant 0.000000e+00 : f32
    %1 = vector.broadcast %cst : f32 to vector<128x32xf32>
    %2 = arith.maximumf %0, %1 : vector<128x32xf32>
    %3 = math.tanh %2 : vector<128x32xf32>
    %c0_1 = arith.constant 0 : index
    %c0_2 = arith.constant 0 : index
    %4 = vector.load %arg2[%c0_1, %c0_2] : memref<128x32xf32, #tpu.memory_space<vmem>>, vector<128x32xf32>
    tpu.vector_store %arg2[%c0_1, %c0_2], %3 {strides = array<i32>} : memref<128x32xf32, #tpu.memory_space<vmem>>, vector<128x32xf32>,
    return
  }
  func.func @transform_0(%arg0: i32) -> (i32, i32) {
    %c0_i32 = arith.constant 0 : i32
    %c0_i32_0 = arith.constant 0 : i32
    return %arg0, %c0_i32 : i32, i32
  }
  func.func @transform_1(%arg0: i32) -> (i32, i32) {
    %c0_i32 = arith.constant 0 : i32
    %c0_i32_0 = arith.constant 0 : i32
    return %arg0, %c0_i32 : i32, i32
  }
}

</mosaic_0001>

<llo_original>
// kernel: tpu_custom_call.1
$region0: #{tpu_custom_call.1}
  #allocation0 [shape = 'u32[]', space=smem, size = 0x4, offset = 0x4, fixed_abs, tag = 'smem constant byte address 0x4 - core index']
  #allocation1 [shape = 'u32[144,128]{1,0:T(1,128)}', space=vmem, size = 0x12000, scoped, tag = 'internal scratch']
  %s0 = inlined_call_operand.vmem [shape: f32[250,32], index: 0, kind: input, shape index: {}]
  %s1 = inlined_call_operand.vmem [shape: f32[250,32], index: 1, kind: output, shape index: {}]
  %s2 = sld [smem:[#allocation0]]
  $region37: #{tpu_custom_call.1} parent=0
    _
  %s4 = ssub.s32 1, %s2
  %s5 = scalar_select 0, %s4, %s2
  loop: start=0, step=1, limit=4
  $region2: #{tpu_custom_call.1} parent=0 // loop_pre_header
    _
  $region3: #{tpu_custom_call.1} parent=0 // loop_header
    %s7 = sphi 0, %s11
    %p8 = scmp.ge.s32.totalorder %s7, 4
    %s17 = sphi 0, %s19
    %s20 = sphi 0, %s17
    %s21 = sphi 0, %s20
    %s37 = sphi 0, %s21
    %s43 = sphi 0, %s45
    %s46 = sphi 0, %s43
    %s47 = sphi 0, %s46
    %s63 = sphi 0, %s47
  $region4: #{tpu_custom_call.1} parent=0 // loop_header_branch
    %10 = sbr.rel (%p8) target = $region8
  $region5: #{tpu_custom_call.1} parent=0 // loop_body
    %s12 = ssub.s32 %s7, 1
    %s13 = ssub.s32 %s7, 2
    %s14 = sadd.s32 %s7, 1
    %s15 = ssub.s32 %s7, %s14
    %p16 = scmp.eq.s32.totalorder %s15, 0
    %s18 = sadd.s32 %s17, 1
    %s19 = scalar_select %p16, %s17, %s18
    %p22 = pneg %p16
    %p23 = scmp.eq.s32.totalorder %s7, 1
    %p24 = por %p22, %p23
    %p25 = scmp.ne.s32.totalorder %s17, %s20
    %p26 = scmp.eq.s32.totalorder %s7, 0
    %p27 = por %p25, %p26
    %p28 = scmp.ne.s32.totalorder %s17, %s20
    %p29 = scmp.eq.s32.totalorder %s12, 1
    %p30 = por %p28, %p29
    %p31 = scmp.ne.s32.totalorder %s20, %s21
    %p32 = scmp.eq.s32.totalorder %s12, 0
    %p33 = por %p31, %p32
    %p34 = scmp.ne.s32.totalorder %s20, %s21
    %p35 = scmp.eq.s32.totalorder %s13, 1
    %p36 = por %p34, %p35
    %p38 = scmp.ne.s32.totalorder %s21, %s37
    %p39 = scmp.eq.s32.totalorder %s13, 0
    %p40 = por %p38, %p39
    %s41 = ssub.s32 %s7, %s14
    %p42 = scmp.eq.s32.totalorder %s41, 0
    %s44 = sadd.s32 %s43, 1
    %s45 = scalar_select %p42, %s43, %s44
    %p48 = pneg %p42
    %p49 = scmp.eq.s32.totalorder %s7, 1
    %p50 = por %p48, %p49
    %p51 = scmp.ne.s32.totalorder %s43, %s46
    %p52 = scmp.eq.s32.totalorder %s7, 0
    %p53 = por %p51, %p52
    %p54 = scmp.ne.s32.totalorder %s43, %s46
    %p55 = scmp.eq.s32.totalorder %s12, 1
    %p56 = por %p54, %p55
    %p57 = scmp.ne.s32.totalorder %s46, %s47
    %p58 = scmp.eq.s32.totalorder %s12, 0
    %p59 = por %p57, %p58
    %p60 = scmp.ne.s32.totalorder %s46, %s47
    %p61 = scmp.eq.s32.totalorder %s13, 1
    %p62 = por %p60, %p61
    %p64 = scmp.ne.s32.totalorder %s47, %s63
    %p65 = scmp.eq.s32.totalorder %s13, 0
    %p66 = por %p64, %p65
    %p67 = scmp.le.s32.totalorder 1, %s7
    %p68 = scmp.lt.s32.totalorder %s7, 3
    %p69 = pnand %p67, %p68
    %p70 = pneg %p69
    // Predicated region
    $region9: #{tpu_custom_call.1} parent=5 // pred_check
      _
    $region10: #{tpu_custom_call.1} parent=5 // pred_check_branch
      %72 = sbr.rel (%p69) target = $region12
    $region11: #{tpu_custom_call.1} parent=5 // pred_region
      %s73 = ssub.s32 %s7, 1
    $region12: #{tpu_custom_call.1} parent=5 // pred_fallthru
      _
    %p74 = scmp.lt.s32.totalorder %s7, 2
    // Predicated region
    $region13: #{tpu_custom_call.1} parent=5 // pred_check
      %p75 = pneg %p74
    $region14: #{tpu_custom_call.1} parent=5 // pred_check_branch
      %77 = sbr.rel (%p75) target = $region16
    $region15: #{tpu_custom_call.1} parent=5 // pred_region
      // Predicated region
      $region17: #{tpu_custom_call.1} parent=15 // pred_check
        %p78 = pneg %p27
      $region18: #{tpu_custom_call.1} parent=15 // pred_check_branch
        %80 = sbr.rel (%p78) target = $region20
      $region19: #{tpu_custom_call.1} parent=15 // pred_region
        %s81 = smul.u32 16, %s7
        %p82 = scmp.lt.s32.totalorder %s81, 31
        %s83 = scalar_select %p82, %s81, 31
        %s84 = smul.addr %s83, 8
        %s85 = scalar_lea.vmem %s0, %s84
        %s86 = smul.u32 16, %s7
      $region20: #{tpu_custom_call.1} parent=15 // pred_fallthru
        _
    $region16: #{tpu_custom_call.1} parent=5 // pred_fallthru
      _
    %p87 = scmp.le.s32.totalorder 1, %s7
    %p88 = scmp.lt.s32.totalorder %s7, 3
    %p89 = pnand %p87, %p88
    %p90 = pneg %p89
    // Predicated region
    $region21: #{tpu_custom_call.1} parent=5 // pred_check
      _
    $region22: #{tpu_custom_call.1} parent=5 // pred_check_branch
      %92 = sbr.rel (%p89) target = $region24
    $region23: #{tpu_custom_call.1} parent=5 // pred_region
      %s93 = ssub.s32 %s7, 1
      %s94 = smul.u32 16, %s12
      %p95 = scmp.lt.s32.totalorder %s94, 31
      %s96 = scalar_select %p95, %s94, 31
      %s97 = smul.addr %s96, 8
      %s98 = scalar_lea.vmem %s0, %s97
      %p99 = pneg %p33
      %p100 = pneg %p30
      %p101 = pneg %p59
      %p102 = pneg %p56
      %s103 = smul.u32 16, %s12
      %p104 = scmp.lt.s32.totalorder %s103, 31
      %s105 = scalar_select %p104, %s103, 31
      %s106 = smul.addr %s105, 8
      %s107 = scalar_lea.vmem %s1, %s106
      %s108 = smul.u32 16, %s12
      %p109 = scmp.lt.s32.totalorder %s108, 31
      %s110 = scalar_select %p109, %s108, 31
      %s111 = smul.addr %s110, 8
      %s112 = scalar_lea.vmem %s0, %s111
      %s113 = smul.u32 16, %s12
      %s114 = smul.u32 16, %s12
      %p115 = scmp.lt.s32.totalorder %s114, 31
      %s116 = scalar_select %p115, %s114, 31
      %s117 = smul.addr %s116, 8
      %s118 = scalar_lea.vmem %s1, %s117
      %s119 = smul.u32 16, %s12
      %v120 = vld [vmem:[%s112] sm:$0xff]
      %v121 = vld [vmem:[%s112 + $0x8] sm:$0xff]
      %v122 = vld [vmem:[%s112 + $0x10] sm:$0xff]
      %v123 = vld [vmem:[%s112 + $0x18] sm:$0xff]
      %v124 = vld [vmem:[%s112 + $0x20] sm:$0xff]
      %v125 = vld [vmem:[%s112 + $0x28] sm:$0xff]
      %v126 = vld [vmem:[%s112 + $0x30] sm:$0xff]
      %v127 = vld [vmem:[%s112 + $0x38] sm:$0xff]
      %v128 = vld [vmem:[%s112 + $0x40] sm:$0xff]
      %v129 = vld [vmem:[%s112 + $0x48] sm:$0xff]
      %v130 = vld [vmem:[%s112 + $0x50] sm:$0xff]
      %v131 = vld [vmem:[%s112 + $0x58] sm:$0xff]
      %v132 = vld [vmem:[%s112 + $0x60] sm:$0xff]
      %v133 = vld [vmem:[%s112 + $0x68] sm:$0xff]
      %v134 = vld [vmem:[%s112 + $0x70] sm:$0xff]
      %v135 = vld [vmem:[%s112 + $0x78] sm:$0xff]
      %v136 = vmax.f32 %v120, 0.0
      %v137 = vmax.f32 %v121, 0.0
      %v138 = vmax.f32 %v122, 0.0
      %v139 = vmax.f32 %v123, 0.0
      %v140 = vmax.f32 %v124, 0.0
      %v141 = vmax.f32 %v125, 0.0
      %v142 = vmax.f32 %v126, 0.0
      %v143 = vmax.f32 %v127, 0.0
      %v144 = vmax.f32 %v128, 0.0
      %v145 = vmax.f32 %v129, 0.0
      %v146 = vmax.f32 %v130, 0.0
      %v147 = vmax.f32 %v131, 0.0
      %v148 = vmax.f32 %v132, 0.0
      %v149 = vmax.f32 %v133, 0.0
      %v150 = vmax.f32 %v134, 0.0
      %v151 = vmax.f32 %v135, 0.0
      %v152 = vtanh.pop %v136
      %v153 = vtanh.pop %v137
      %v154 = vtanh.pop %v138
      %v155 = vtanh.pop %v139
      %v156 = vtanh.pop %v140
      %v157 = vtanh.pop %v141
      %v158 = vtanh.pop %v142
      %v159 = vtanh.pop %v143
      %v160 = vtanh.pop %v144
      %v161 = vtanh.pop %v145
      %v162 = vtanh.pop %v146
      %v163 = vtanh.pop %v147
      %v164 = vtanh.pop %v148
      %v165 = vtanh.pop %v149
      %v166 = vtanh.pop %v150
      %v167 = vtanh.pop %v151
      %vm168 = vcmask 261120
      %169 = vst.msk [vmem:[%s118] sm:$0xff] %vm168, %v152
      %170 = vst.msk [vmem:[%s118 + $0x8] sm:$0xff] %vm168, %v153
      %171 = vst.msk [vmem:[%s118 + $0x10] sm:$0xff] %vm168, %v154
      %172 = vst.msk [vmem:[%s118 + $0x18] sm:$0xff] %vm168, %v155
      %173 = vst.msk [vmem:[%s118 + $0x20] sm:$0xff] %vm168, %v156
      %174 = vst.msk [vmem:[%s118 + $0x28] sm:$0xff] %vm168, %v157
      %175 = vst.msk [vmem:[%s118 + $0x30] sm:$0xff] %vm168, %v158
      %176 = vst.msk [vmem:[%s118 + $0x38] sm:$0xff] %vm168, %v159
      %177 = vst.msk [vmem:[%s118 + $0x40] sm:$0xff] %vm168, %v160
      %178 = vst.msk [vmem:[%s118 + $0x48] sm:$0xff] %vm168, %v161
      %179 = vst.msk [vmem:[%s118 + $0x50] sm:$0xff] %vm168, %v162
      %180 = vst.msk [vmem:[%s118 + $0x58] sm:$0xff] %vm168, %v163
      %181 = vst.msk [vmem:[%s118 + $0x60] sm:$0xff] %vm168, %v164
      %182 = vst.msk [vmem:[%s118 + $0x68] sm:$0xff] %vm168, %v165
      %183 = vst.msk [vmem:[%s118 + $0x70] sm:$0xff] %vm168, %v166
      %184 = vst.msk [vmem:[%s118 + $0x78] sm:$0xff] %vm168, %v167
      %s185 = smul.u32 16, %s12
      %p186 = scmp.lt.s32.totalorder %s185, 31
      %s187 = scalar_select %p186, %s185, 31
      %s188 = smul.addr %s187, 8
      %s189 = scalar_lea.vmem %s1, %s188
      // Predicated region
      $region25: #{tpu_custom_call.1} parent=23 // pred_check
        %p190 = pneg %p56
      $region26: #{tpu_custom_call.1} parent=23 // pred_check_branch
        %192 = sbr.rel (%p190) target = $region28
      $region27: #{tpu_custom_call.1} parent=23 // pred_region
        %s193 = smul.u32 16, %s12
      $region28: #{tpu_custom_call.1} parent=23 // pred_fallthru
        _
    $region24: #{tpu_custom_call.1} parent=5 // pred_fallthru
      _
    %p194 = scmp.le.s32.totalorder 2, %s7
    // Predicated region
    $region29: #{tpu_custom_call.1} parent=5 // pred_check
      %p195 = pneg %p194
    $region30: #{tpu_custom_call.1} parent=5 // pred_check_branch
      %197 = sbr.rel (%p195) target = $region32
    $region31: #{tpu_custom_call.1} parent=5 // pred_region
      %s198 = ssub.s32 %s7, 2
      // Predicated region
      $region33: #{tpu_custom_call.1} parent=31 // pred_check
        %p199 = pneg %p62
      $region34: #{tpu_custom_call.1} parent=31 // pred_check_branch
        %201 = sbr.rel (%p199) target = $region36
      $region35: #{tpu_custom_call.1} parent=31 // pred_region
        %s202 = smul.u32 16, %s13
        %p203 = scmp.lt.s32.totalorder %s202, 31
        %s204 = scalar_select %p203, %s202, 31
        %s205 = smul.addr %s204, 8
        %s206 = scalar_lea.vmem %s1, %s205
      $region36: #{tpu_custom_call.1} parent=31 // pred_fallthru
        _
    $region32: #{tpu_custom_call.1} parent=5 // pred_fallthru
      _
  $region6: #{tpu_custom_call.1} parent=0 // loop_footer
    %s11 = sadd.s32 1, %s7
  $region7: #{tpu_custom_call.1} parent=0 // loop_footer_branch
    %6 = sbr.rel target = $region3
  $region8: #{tpu_custom_call.1} parent=0 // loop_exit
    _

</llo_original>
